<compile_context>
chip_gen: v6e
topology: v6e:2x2x1
jax: 0.10.0
libtpu: 0.0.40
codegen_flags: <defaults>
</compile_context>

<pallas_src>
import jax
import jax.numpy as jnp
from jax.experimental import pallas as pl
from jax.experimental.pallas import tpu as pltpu


def _defended_kernel(x_ref, noise_ref, inv_std_ref, w_ref, b_ref, out_ref):
    # x_ref:       (Bt, D)      normalized (post-transform) images, flattened
    # noise_ref:   (Bt, S, D)   raw-image-space augmentation noise
    # inv_std_ref: (1, D)       per-feature 1/std (per-channel, broadcast over H*W)
    # w_ref:       (D, NCP)     linear classifier weight (NC zero-padded to NCP lanes)
    # b_ref:       (1, NCP)     linear classifier bias   (zero-padded)
    # out_ref:     (Bt, NCP)    aggregated logits
    S = noise_ref.shape[1]

    # Sample-mean of the noise (aggregation hoisted in front of the affine network).
    n_bar = jnp.sum(noise_ref[...], axis=1) * (1.0 / S)          # (Bt, D)

    # Folded de-normalize -> add noise -> re-normalize:  x + n̄ * inv_std
    x_net = x_ref[...] + n_bar * inv_std_ref[...]                # (Bt, D)

    # network (Linear D -> NCP) + bias, added once per image.
    logits = jnp.dot(x_net, w_ref[...], preferred_element_type=jnp.float32)
    out_ref[...] = (logits + b_ref[...]).astype(out_ref.dtype)


def defended_forward(x_nchw, noise, mean_c, std_c, w, b, *, sample_rate):
    """x_nchw: (B, C, H, W) normalized input. noise: (B, S, C, H, W) raw-space noise."""
    B, C, H, W = x_nchw.shape
    S = sample_rate
    D = C * H * W
    NC = w.shape[1]

    # Sublane-dense batch tiling and lane-dense output padding.
    Bt = 8
    B_pad = ((B + Bt - 1) // Bt) * Bt
    NCP = ((NC + 127) // 128) * 128

    x_flat = x_nchw.reshape(B, D)
    noise_flat = noise.reshape(B, S, D)
    if B_pad != B:
        x_flat = jnp.pad(x_flat, ((0, B_pad - B), (0, 0)))
        noise_flat = jnp.pad(noise_flat, ((0, B_pad - B), (0, 0), (0, 0)))

    # Per-channel 1/std broadcast to per-feature vector of length D (channel-major,
    # matching torch .view order). mean cancels algebraically and is not needed.
    inv_std_feat = jnp.repeat(1.0 / std_c, H * W).reshape(1, D)
    w_pad = jnp.pad(w, ((0, 0), (0, NCP - NC)))
    b_pad = jnp.pad(b, (0, NCP - NC)).reshape(1, NCP)

    out = pl.pallas_call(
        _defended_kernel,
        out_shape=jax.ShapeDtypeStruct((B_pad, NCP), jnp.float32),
        grid_spec=pltpu.PrefetchScalarGridSpec(
            num_scalar_prefetch=0,
            grid=(B_pad // Bt,),
            in_specs=[
                pl.BlockSpec((Bt, D), lambda bi: (bi, 0)),        # x
                pl.BlockSpec((Bt, S, D), lambda bi: (bi, 0, 0)),  # noise
                pl.BlockSpec((1, D), lambda bi: (0, 0)),          # inv_std
                pl.BlockSpec((D, NCP), lambda bi: (0, 0)),        # W (padded)
                pl.BlockSpec((1, NCP), lambda bi: (0, 0)),        # bias (padded)
            ],
            out_specs=pl.BlockSpec((Bt, NCP), lambda bi: (bi, 0)),
        ),
        compiler_params=pltpu.CompilerParams(
            dimension_semantics=("parallel",)),
    )(x_flat, noise_flat, inv_std_feat, w_pad, b_pad)

    return out[:B, :NC]


def reference_forward(x_nchw, noise, mean_c, std_c, w, b, *, sample_rate):
    """Pure-JAX reference matching the PyTorch module op-for-op (unfused)."""
    B, C, H, W = x_nchw.shape
    S = sample_rate
    D = C * H * W
    mean = jnp.repeat(mean_c, H * W).reshape(1, D)
    std = jnp.repeat(std_c, H * W).reshape(1, D)
    x = x_nchw.reshape(B, D)
    x_raw = x * std + mean                                   # inverse_transform
    x_rep = jnp.repeat(x_raw, S, axis=0)                     # repeat_batch_images
    x_aug = x_rep + noise.reshape(B * S, D)                  # data_augmentation
    x_net = (x_aug - mean) / std                             # transform
    logits = x_net @ w + b[None, :]                          # network
    logits = logits.reshape(B, S, -1)
    return jnp.sum(logits, axis=1) / S                       # aggregate 'mean'


if __name__ == "__main__":
    # Small shapes consistent with the module: batch=2, channels=4, spatial=16.
    B, C, H, W = 2, 4, 16, 16
    SAMPLE_RATE = 10
    NUM_CLASSES = 10
    D = C * H * W
    NOISE_STD = 0.25

    key = jax.random.PRNGKey(0)
    kx, kn, kw, kb = jax.random.split(key, 4)

    # Normalized (post-transform) input, as the defence expects.
    x = jax.random.normal(kx, (B, C, H, W), dtype=jnp.float32)
    # Deterministic augmentation noise (Gaussian, raw-image space).
    # TODO(synk): the module draws this noise inside data_augmentation each call;
    # here it is passed in as a tensor so the kernel is deterministic.
    noise = NOISE_STD * jax.random.normal(
        kn, (B, SAMPLE_RATE, C, H, W), dtype=jnp.float32)

    # Per-channel normalization constants (CIFAR-like, 4 channels).
    mean_c = jnp.array([0.4914, 0.4822, 0.4465, 0.4500], dtype=jnp.float32)
    std_c = jnp.array([0.2023, 0.1994, 0.2010, 0.2000], dtype=jnp.float32)

    # Deterministic "network" parameters: Linear(D -> NUM_CLASSES).
    w = 0.02 * jax.random.normal(kw, (D, NUM_CLASSES), dtype=jnp.float32)
    b = 0.01 * jax.random.normal(kb, (NUM_CLASSES,), dtype=jnp.float32)

    out = defended_forward(x, noise, mean_c, std_c, w, b,
                           sample_rate=SAMPLE_RATE)
    out = jax.block_until_ready(out)

    ref = reference_forward(x, noise, mean_c, std_c, w, b,
                            sample_rate=SAMPLE_RATE)
    assert out.shape == (B, NUM_CLASSES)
    assert jnp.allclose(out, ref, atol=1e-4, rtol=1e-4), "mismatch vs reference"

    print("KERNEL_OK")
</pallas_src>

<mosaic_0001>
module attributes {stable_mosaic.version = 11 : i64} {
  func.func @_defended_kernel(%arg0: i32, %arg1: memref<8x1024xf32, #tpu.memory_space<vmem>>, %arg2: memref<8x10x1024xf32, #tpu.memory_space<vmem>>, %arg3: memref<1x1024xf32, #tpu.memory_space<vmem>>, %arg4: memref<1024x128xf32, #tpu.memory_space<vmem>>, %arg5: memref<1x128xf32, #tpu.memory_space<vmem>>, %arg6: memref<8x128xf32, #tpu.memory_space<vmem>>) attributes {dimension_semantics = [#tpu.dimension_semantics<parallel>], iteration_bounds = array<i64: 1>, scalar_prefetch = 0 : i64, scratch_operands = 0 : i64, tpu.core_type = #tpu.core_type<tc>, window_params = [{transform_indices = @transform_0, window_bounds = array<i64: 8, 1024>}, {transform_indices = @transform_1, window_bounds = array<i64: 8, 10, 1024>}, {pipeline_mode = #tpu.pipeline_mode<synchronous>, transform_indices = @transform_2, window_bounds = array<i64: 1, 1024>}, {pipeline_mode = #tpu.pipeline_mode<synchronous>, transform_indices = @transform_3, window_bounds = array<i64: 1024, 128>}, {pipeline_mode = #tpu.pipeline_mode<synchronous>, transform_indices = @transform_4, window_bounds = array<i64: 1, 128>}, {transform_indices = @transform_5, window_bounds = array<i64: 8, 128>}]} {
    %c0 = arith.constant 0 : index
    %c0_0 = arith.constant 0 : index
    %c0_1 = arith.constant 0 : index
    %0 = vector.load %arg2[%c0, %c0_0, %c0_1] : memref<8x10x1024xf32, #tpu.memory_space<vmem>>, vector<8x10x1024xf32>
    %cst = arith.constant dense<0.000000e+00> : vector<8x1024xf32>
    %1 = vector.multi_reduction <add>, %0, %cst [1] : vector<8x10x1024xf32> to vector<8x1024xf32>
    %cst_2 = arith.constant 1.000000e-01 : f32
    %2 = vector.broadcast %cst_2 : f32 to vector<8x1024xf32>
    %3 = arith.mulf %1, %2 : vector<8x1024xf32>
    %c0_3 = arith.constant 0 : index
    %c0_4 = arith.constant 0 : index
    %4 = vector.load %arg1[%c0_3, %c0_4] : memref<8x1024xf32, #tpu.memory_space<vmem>>, vector<8x1024xf32>
    %c0_5 = arith.constant 0 : index
    %c0_6 = arith.constant 0 : index
    %5 = vector.load %arg3[%c0_5, %c0_6] : memref<1x1024xf32, #tpu.memory_space<vmem>>, vector<1x1024xf32>
    %6 = vector.broadcast %5 : vector<1x1024xf32> to vector<8x1024xf32>
    %7 = arith.mulf %3, %6 : vector<8x1024xf32>
    %8 = arith.addf %4, %7 : vector<8x1024xf32>
    %c0_7 = arith.constant 0 : index
    %c0_8 = arith.constant 0 : index
    %9 = vector.load %arg4[%c0_7, %c0_8] : memref<1024x128xf32, #tpu.memory_space<vmem>>, vector<1024x128xf32>
    %cst_9 = arith.constant dense<0.000000e+00> : vector<8x128xf32>
    %10 = tpu.matmul %8, %9, %cst_9 {dimension_numbers = #tpu.dot_dimension_numbers<[1], [0], [0], [1], [0, 0, 1, 1], [], []>} : vector<8x1024xf32>, vector<1024x128xf32>, vector<8x128xf32> -> vector<8x128xf32>
    %c0_10 = arith.constant 0 : index
    %c0_11 = arith.constant 0 : index
    %11 = vector.load %arg5[%c0_10, %c0_11] : memref<1x128xf32, #tpu.memory_space<vmem>>, vector<1x128xf32>
    %12 = vector.broadcast %11 : vector<1x128xf32> to vector<8x128xf32>
    %13 = arith.addf %10, %12 : vector<8x128xf32>
    %c0_12 = arith.constant 0 : index
    %c0_13 = arith.constant 0 : index
    %14 = vector.load %arg6[%c0_12, %c0_13] : memref<8x128xf32, #tpu.memory_space<vmem>>, vector<8x128xf32>
    tpu.vector_store %arg6[%c0_12, %c0_13], %13 {strides = array<i32>} : memref<8x128xf32, #tpu.memory_space<vmem>>, vector<8x128xf32>,
    return
  }
  func.func @transform_0(%arg0: i32) -> (i32, i32) {
    %c0_i32 = arith.constant 0 : i32
    %c0_i32_0 = arith.constant 0 : i32
    return %arg0, %c0_i32 : i32, i32
  }
  func.func @transform_1(%arg0: i32) -> (i32, i32, i32) {
    %c0_i32 = arith.constant 0 : i32
    %c0_i32_0 = arith.constant 0 : i32
    %c0_i32_1 = arith.constant 0 : i32
    return %arg0, %c0_i32, %c0_i32_0 : i32, i32, i32
  }
  func.func @transform_2(%arg0: i32) -> (i32, i32) {
    %c0_i32 = arith.constant 0 : i32
    %c0_i32_0 = arith.constant 0 : i32
    %c0_i32_1 = arith.constant 0 : i32
    return %c0_i32, %c0_i32_0 : i32, i32
  }
  func.func @transform_3(%arg0: i32) -> (i32, i32) {
    %c0_i32 = arith.constant 0 : i32
    %c0_i32_0 = arith.constant 0 : i32
    %c0_i32_1 = arith.constant 0 : i32
    return %c0_i32, %c0_i32_0 : i32, i32
  }
  func.func @transform_4(%arg0: i32) -> (i32, i32) {
    %c0_i32 = arith.constant 0 : i32
    %c0_i32_0 = arith.constant 0 : i32
    %c0_i32_1 = arith.constant 0 : i32
    return %c0_i32, %c0_i32_0 : i32, i32
  }
  func.func @transform_5(%arg0: i32) -> (i32, i32) {
    %c0_i32 = arith.constant 0 : i32
    %c0_i32_0 = arith.constant 0 : i32
    return %arg0, %c0_i32 : i32, i32
  }
}

</mosaic_0001>

<llo_original>
// kernel: tpu_custom_call.1
$region0: #{tpu_custom_call.1}
  #allocation0 [shape = 'u32[]', space=smem, size = 0x4, offset = 0x4, fixed_abs, tag = 'smem constant byte address 0x4 - core index']
  #allocation1 [shape = 'u32[144,128]{1,0:T(1,128)}', space=vmem, size = 0x12000, scoped, tag = 'internal scratch']
  %s0 = inlined_call_operand.vmem [shape: f32[8,1024], index: 0, kind: input, shape index: {}]
  %s1 = inlined_call_operand.vmem [shape: f32[8,10,1024], index: 1, kind: input, shape index: {}]
  %s2 = inlined_call_operand.vmem [shape: f32[1,1024], index: 2, kind: input, shape index: {}]
  %s3 = inlined_call_operand.vmem [shape: f32[1024,128], index: 3, kind: input, shape index: {}]
  %s4 = inlined_call_operand.vmem [shape: f32[1,128], index: 4, kind: input, shape index: {}]
  %s5 = inlined_call_operand.hbm [shape: f32[8,128], index: 5, kind: output, shape index: {}]
  %s6 = sld [smem:[#allocation0]]
  $region30: #{tpu_custom_call.1} parent=0
    _
  %s8 = ssub.s32 1, %s6
  %s9 = scalar_select 0, %s8, %s6
  $region1: #{tpu_custom_call.1} parent=0
    #allocation2 [shape = 'u8[4096]{0}', space=vmem, size = 0x1000, scoped, tag = 'output window, operand 0, single buffered']
    #allocation3 [shape = 's32[1]{0}', space=sflag, size = 0x4, scoped, tag = 'scoped memory for tpu_custom_call.1']
    %10 = vsyncpa [#allocation3], 0
    // Predicated region
    $region2: #{tpu_custom_call.1} parent=1 // pred_check
      _
    $region3: #{tpu_custom_call.1} parent=1 // pred_check_branch
      %12 = sbr.rel (0) target = $region5
    $region4: #{tpu_custom_call.1} parent=1 // pred_region
      _
    $region5: #{tpu_custom_call.1} parent=1 // pred_fallthru
      _
    // Predicated region
    $region6: #{tpu_custom_call.1} parent=1 // pred_check
      _
    $region7: #{tpu_custom_call.1} parent=1 // pred_check_branch
      %14 = sbr.rel (0) target = $region9
    $region8: #{tpu_custom_call.1} parent=1 // pred_region
      _
    $region9: #{tpu_custom_call.1} parent=1 // pred_fallthru
      _
    // Predicated region
    $region10: #{tpu_custom_call.1} parent=1 // pred_check
      _
    $region11: #{tpu_custom_call.1} parent=1 // pred_check_branch
      %16 = sbr.rel (0) target = $region13
    $region12: #{tpu_custom_call.1} parent=1 // pred_region
      _
    $region13: #{tpu_custom_call.1} parent=1 // pred_fallthru
      _
    // Predicated region
    $region14: #{tpu_custom_call.1} parent=1 // pred_check
      _
    $region15: #{tpu_custom_call.1} parent=1 // pred_check_branch
      %18 = sbr.rel (0) target = $region17
    $region16: #{tpu_custom_call.1} parent=1 // pred_region
      _
    $region17: #{tpu_custom_call.1} parent=1 // pred_fallthru
      _
    // Predicated region
    $region18: #{tpu_custom_call.1} parent=1 // pred_check
      _
    $region19: #{tpu_custom_call.1} parent=1 // pred_check_branch
      %20 = sbr.rel (0) target = $region21
    $region20: #{tpu_custom_call.1} parent=1 // pred_region
      _
    $region21: #{tpu_custom_call.1} parent=1 // pred_fallthru
      _
    %v21 = vld [vmem:[%s1] sm:$0xff]
    %v22 = vld [vmem:[%s1 + $0x8] sm:$0xff]
    %v23 = vld [vmem:[%s1 + $0x10] sm:$0xff]
    %v24 = vld [vmem:[%s1 + $0x18] sm:$0xff]
    %v25 = vld [vmem:[%s1 + $0x20] sm:$0xff]
    %v26 = vld [vmem:[%s1 + $0x28] sm:$0xff]
    %v27 = vld [vmem:[%s1 + $0x30] sm:$0xff]
    %v28 = vld [vmem:[%s1 + $0x38] sm:$0xff]
    %v29 = vld [vmem:[%s1 + $0x40] sm:$0x3]
    %v30 = vld [vmem:[%s1 + $0x48] sm:$0x3]
    %v31 = vld [vmem:[%s1 + $0x50] sm:$0x3]
    %v32 = vld [vmem:[%s1 + $0x58] sm:$0x3]
    %v33 = vld [vmem:[%s1 + $0x60] sm:$0x3]
    %v34 = vld [vmem:[%s1 + $0x68] sm:$0x3]
    %v35 = vld [vmem:[%s1 + $0x70] sm:$0x3]
    %v36 = vld [vmem:[%s1 + $0x78] sm:$0x3]
    %v37 = vld [vmem:[%s1 + $0x80] sm:$0xff]
    %v38 = vld [vmem:[%s1 + $0x88] sm:$0xff]
    %v39 = vld [vmem:[%s1 + $0x90] sm:$0xff]
    %v40 = vld [vmem:[%s1 + $0x98] sm:$0xff]
    %v41 = vld [vmem:[%s1 + $0xa0] sm:$0xff]
    %v42 = vld [vmem:[%s1 + $0xa8] sm:$0xff]
    %v43 = vld [vmem:[%s1 + $0xb0] sm:$0xff]
    %v44 = vld [vmem:[%s1 + $0xb8] sm:$0xff]
    %v45 = vld [vmem:[%s1 + $0xc0] sm:$0x3]
    %v46 = vld [vmem:[%s1 + $0xc8] sm:$0x3]
    %v47 = vld [vmem:[%s1 + $0xd0] sm:$0x3]
    %v48 = vld [vmem:[%s1 + $0xd8] sm:$0x3]
    %v49 = vld [vmem:[%s1 + $0xe0] sm:$0x3]
    %v50 = vld [vmem:[%s1 + $0xe8] sm:$0x3]
    %v51 = vld [vmem:[%s1 + $0xf0] sm:$0x3]
    %v52 = vld [vmem:[%s1 + $0xf8] sm:$0x3]
    %v53 = vld [vmem:[%s1 + $0x100] sm:$0xff]
    %v54 = vld [vmem:[%s1 + $0x108] sm:$0xff]
    %v55 = vld [vmem:[%s1 + $0x110] sm:$0xff]
    %v56 = vld [vmem:[%s1 + $0x118] sm:$0xff]
    %v57 = vld [vmem:[%s1 + $0x120] sm:$0xff]
    %v58 = vld [vmem:[%s1 + $0x128] sm:$0xff]
    %v59 = vld [vmem:[%s1 + $0x130] sm:$0xff]
    %v60 = vld [vmem:[%s1 + $0x138] sm:$0xff]
    %v61 = vld [vmem:[%s1 + $0x140] sm:$0x3]
    %v62 = vld [vmem:[%s1 + $0x148] sm:$0x3]
    %v63 = vld [vmem:[%s1 + $0x150] sm:$0x3]
    %v64 = vld [vmem:[%s1 + $0x158] sm:$0x3]
    %v65 = vld [vmem:[%s1 + $0x160] sm:$0x3]
    %v66 = vld [vmem:[%s1 + $0x168] sm:$0x3]
    %v67 = vld [vmem:[%s1 + $0x170] sm:$0x3]
    %v68 = vld [vmem:[%s1 + $0x178] sm:$0x3]
    %v69 = vld [vmem:[%s1 + $0x180] sm:$0xff]
    %v70 = vld [vmem:[%s1 + $0x188] sm:$0xff]
    %v71 = vld [vmem:[%s1 + $0x190] sm:$0xff]
    %v72 = vld [vmem:[%s1 + $0x198] sm:$0xff]
    %v73 = vld [vmem:[%s1 + $0x1a0] sm:$0xff]
    %v74 = vld [vmem:[%s1 + $0x1a8] sm:$0xff]
    %v75 = vld [vmem:[%s1 + $0x1b0] sm:$0xff]
    %v76 = vld [vmem:[%s1 + $0x1b8] sm:$0xff]
    %v77 = vld [vmem:[%s1 + $0x1c0] sm:$0x3]
    %v78 = vld [vmem:[%s1 + $0x1c8] sm:$0x3]
    %v79 = vld [vmem:[%s1 + $0x1d0] sm:$0x3]
    %v80 = vld [vmem:[%s1 + $0x1d8] sm:$0x3]
    %v81 = vld [vmem:[%s1 + $0x1e0] sm:$0x3]
    %v82 = vld [vmem:[%s1 + $0x1e8] sm:$0x3]
    %v83 = vld [vmem:[%s1 + $0x1f0] sm:$0x3]
    %v84 = vld [vmem:[%s1 + $0x1f8] sm:$0x3]
    %v85 = vld [vmem:[%s1 + $0x200] sm:$0xff]
    %v86 = vld [vmem:[%s1 + $0x208] sm:$0xff]
    %v87 = vld [vmem:[%s1 + $0x210] sm:$0xff]
    %v88 = vld [vmem:[%s1 + $0x218] sm:$0xff]
    %v89 = vld [vmem:[%s1 + $0x220] sm:$0xff]
    %v90 = vld [vmem:[%s1 + $0x228] sm:$0xff]
    %v91 = vld [vmem:[%s1 + $0x230] sm:$0xff]
    %v92 = vld [vmem:[%s1 + $0x238] sm:$0xff]
    %v93 = vld [vmem:[%s1 + $0x240] sm:$0x3]
    %v94 = vld [vmem:[%s1 + $0x248] sm:$0x3]
    %v95 = vld [vmem:[%s1 + $0x250] sm:$0x3]
    %v96 = vld [vmem:[%s1 + $0x258] sm:$0x3]
    %v97 = vld [vmem:[%s1 + $0x260] sm:$0x3]
    %v98 = vld [vmem:[%s1 + $0x268] sm:$0x3]
    %v99 = vld [vmem:[%s1 + $0x270] sm:$0x3]
    %v100 = vld [vmem:[%s1 + $0x278] sm:$0x3]
    %v101 = vld [vmem:[%s1 + $0x280] sm:$0xff]
    %v102 = vld [vmem:[%s1 + $0x288] sm:$0xff]
    %v103 = vld [vmem:[%s1 + $0x290] sm:$0xff]
    %v104 = vld [vmem:[%s1 + $0x298] sm:$0xff]
    %v105 = vld [vmem:[%s1 + $0x2a0] sm:$0xff]
    %v106 = vld [vmem:[%s1 + $0x2a8] sm:$0xff]
    %v107 = vld [vmem:[%s1 + $0x2b0] sm:$0xff]
    %v108 = vld [vmem:[%s1 + $0x2b8] sm:$0xff]
    %v109 = vld [vmem:[%s1 + $0x2c0] sm:$0x3]
    %v110 = vld [vmem:[%s1 + $0x2c8] sm:$0x3]
    %v111 = vld [vmem:[%s1 + $0x2d0] sm:$0x3]
    %v112 = vld [vmem:[%s1 + $0x2d8] sm:$0x3]
    %v113 = vld [vmem:[%s1 + $0x2e0] sm:$0x3]
    %v114 = vld [vmem:[%s1 + $0x2e8] sm:$0x3]
    %v115 = vld [vmem:[%s1 + $0x2f0] sm:$0x3]
    %v116 = vld [vmem:[%s1 + $0x2f8] sm:$0x3]
    %v117 = vld [vmem:[%s1 + $0x300] sm:$0xff]
    %v118 = vld [vmem:[%s1 + $0x308] sm:$0xff]
    %v119 = vld [vmem:[%s1 + $0x310] sm:$0xff]
    %v120 = vld [vmem:[%s1 + $0x318] sm:$0xff]
    %v121 = vld [vmem:[%s1 + $0x320] sm:$0xff]
    %v122 = vld [vmem:[%s1 + $0x328] sm:$0xff]
    %v123 = vld [vmem:[%s1 + $0x330] sm:$0xff]
    %v124 = vld [vmem:[%s1 + $0x338] sm:$0xff]
    %v125 = vld [vmem:[%s1 + $0x340] sm:$0x3]
    %v126 = vld [vmem:[%s1 + $0x348] sm:$0x3]
    %v127 = vld [vmem:[%s1 + $0x350] sm:$0x3]
    %v128 = vld [vmem:[%s1 + $0x358] sm:$0x3]
    %v129 = vld [vmem:[%s1 + $0x360] sm:$0x3]
    %v130 = vld [vmem:[%s1 + $0x368] sm:$0x3]
    %v131 = vld [vmem:[%s1 + $0x370] sm:$0x3]
    %v132 = vld [vmem:[%s1 + $0x378] sm:$0x3]
    %v133 = vld [vmem:[%s1 + $0x380] sm:$0xff]
    %v134 = vld [vmem:[%s1 + $0x388] sm:$0xff]
    %v135 = vld [vmem:[%s1 + $0x390] sm:$0xff]
    %v136 = vld [vmem:[%s1 + $0x398] sm:$0xff]
    %v137 = vld [vmem:[%s1 + $0x3a0] sm:$0xff]
    %v138 = vld [vmem:[%s1 + $0x3a8] sm:$0xff]
    %v139 = vld [vmem:[%s1 + $0x3b0] sm:$0xff]
    %v140 = vld [vmem:[%s1 + $0x3b8] sm:$0xff]
    %v141 = vld [vmem:[%s1 + $0x3c0] sm:$0x3]
    %v142 = vld [vmem:[%s1 + $0x3c8] sm:$0x3]
    %v143 = vld [vmem:[%s1 + $0x3d0] sm:$0x3]
    %v144 = vld [vmem:[%s1 + $0x3d8] sm:$0x3]
    %v145 = vld [vmem:[%s1 + $0x3e0] sm:$0x3]
    %v146 = vld [vmem:[%s1 + $0x3e8] sm:$0x3]
    %v147 = vld [vmem:[%s1 + $0x3f0] sm:$0x3]
    %v148 = vld [vmem:[%s1 + $0x3f8] sm:$0x3]
    %vm149 = vcmask 1041408
    %v150 = vsel %vm149, %v29, 0.0
    %v151 = vadd.f32 %v21, %v150
    %v152 = vrot.slane %v151, 4
    %v153 = vadd.f32 %v151, %v152
    %v154 = vrot.slane %v153, 2
    %v155 = vadd.f32 %v153, %v154
    %v156 = vrot.slane %v155, 1
    %v157 = vadd.f32 %v155, %v156
    %v158 = vsel %vm149, %v30, 0.0
    %v159 = vadd.f32 %v22, %v158
    %v160 = vrot.slane %v159, 4
    %v161 = vadd.f32 %v159, %v160
    %v162 = vrot.slane %v161, 2
    %v163 = vadd.f32 %v161, %v162
    %v164 = vrot.slane %v163, 1
    %v165 = vadd.f32 %v163, %v164
    %v166 = vsel %vm149, %v31, 0.0
    %v167 = vadd.f32 %v23, %v166
    %v168 = vrot.slane %v167, 4
    %v169 = vadd.f32 %v167, %v168
    %v170 = vrot.slane %v169, 2
    %v171 = vadd.f32 %v169, %v170
    %v172 = vrot.slane %v171, 1
    %v173 = vadd.f32 %v171, %v172
    %v174 = vsel %vm149, %v32, 0.0
    %v175 = vadd.f32 %v24, %v174
    %v176 = vrot.slane %v175, 4
    %v177 = vadd.f32 %v175, %v176
    %v178 = vrot.slane %v177, 2
    %v179 = vadd.f32 %v177, %v178
    %v180 = vrot.slane %v179, 1
    %v181 = vadd.f32 %v179, %v180
    %v182 = vsel %vm149, %v33, 0.0
    %v183 = vadd.f32 %v25, %v182
    %v184 = vrot.slane %v183, 4
    %v185 = vadd.f32 %v183, %v184
    %v186 = vrot.slane %v185, 2
    %v187 = vadd.f32 %v185, %v186
    %v188 = vrot.slane %v187, 1
    %v189 = vadd.f32 %v187, %v188
    %v190 = vsel %vm149, %v34, 0.0
    %v191 = vadd.f32 %v26, %v190
    %v192 = vrot.slane %v191, 4
    %v193 = vadd.f32 %v191, %v192
    %v194 = vrot.slane %v193, 2
    %v195 = vadd.f32 %v193, %v194
    %v196 = vrot.slane %v195, 1
    %v197 = vadd.f32 %v195, %v196
    %v198 = vsel %vm149, %v35, 0.0
    %v199 = vadd.f32 %v27, %v198
    %v200 = vrot.slane %v199, 4
    %v201 = vadd.f32 %v199, %v200
    %v202 = vrot.slane %v201, 2
    %v203 = vadd.f32 %v201, %v202
    %v204 = vrot.slane %v203, 1
    %v205 = vadd.f32 %v203, %v204
    %v206 = vsel %vm149, %v36, 0.0
    %v207 = vadd.f32 %v28, %v206
    %v208 = vrot.slane %v207, 4
    %v209 = vadd.f32 %v207, %v208
    %v210 = vrot.slane %v209, 2
    %v211 = vadd.f32 %v209, %v210
    %v212 = vrot.slane %v211, 1
    %v213 = vadd.f32 %v211, %v212
    %v214 = vsel %vm149, %v45, 0.0
    %v215 = vadd.f32 %v37, %v214
    %v216 = vrot.slane %v215, 4
    %v217 = vadd.f32 %v215, %v216
    %v218 = vrot.slane %v217, 2
    %v219 = vadd.f32 %v217, %v218
    %v220 = vrot.slane %v219, 1
    %v221 = vadd.f32 %v219, %v220
    %v222 = vsel %vm149, %v46, 0.0
    %v223 = vadd.f32 %v38, %v222
    %v224 = vrot.slane %v223, 4
    %v225 = vadd.f32 %v223, %v224
    %v226 = vrot.slane %v225, 2
    %v227 = vadd.f32 %v225, %v226
    %v228 = vrot.slane %v227, 1
    %v229 = vadd.f32 %v227, %v228
    %v230 = vsel %vm149, %v47, 0.0
    %v231 = vadd.f32 %v39, %v230
    %v232 = vrot.slane %v231, 4
    %v233 = vadd.f32 %v231, %v232
    %v234 = vrot.slane %v233, 2
    %v235 = vadd.f32 %v233, %v234
    %v236 = vrot.slane %v235, 1
    %v237 = vadd.f32 %v235, %v236
    %v238 = vsel %vm149, %v48, 0.0
    %v239 = vadd.f32 %v40, %v238
    %v240 = vrot.slane %v239, 4
    %v241 = vadd.f32 %v239, %v240
    %v242 = vrot.slane %v241, 2
    %v243 = vadd.f32 %v241, %v242
    %v244 = vrot.slane %v243, 1
    %v245 = vadd.f32 %v243, %v244
    %v246 = vsel %vm149, %v49, 0.0
    %v247 = vadd.f32 %v41, %v246
    %v248 = vrot.slane %v247, 4
    %v249 = vadd.f32 %v247, %v248
    %v250 = vrot.slane %v249, 2
    %v251 = vadd.f32 %v249, %v250
    %v252 = vrot.slane %v251, 1
    %v253 = vadd.f32 %v251, %v252
    %v254 = vsel %vm149, %v50, 0.0
    %v255 = vadd.f32 %v42, %v254
    %v256 = vrot.slane %v255, 4
    %v257 = vadd.f32 %v255, %v256
    %v258 = vrot.slane %v257, 2
    %v259 = vadd.f32 %v257, %v258
    %v260 = vrot.slane %v259, 1
    %v261 = vadd.f32 %v259, %v260
    %v262 = vsel %vm149, %v51, 0.0
    %v263 = vadd.f32 %v43, %v262
    %v264 = vrot.slane %v263, 4
    %v265 = vadd.f32 %v263, %v264
    %v266 = vrot.slane %v265, 2
    %v267 = vadd.f32 %v265, %v266
    %v268 = vrot.slane %v267, 1
    %v269 = vadd.f32 %v267, %v268
    %v270 = vsel %vm149, %v52, 0.0
    %v271 = vadd.f32 %v44, %v270
    %v272 = vrot.slane %v271, 4
    %v273 = vadd.f32 %v271, %v272
    %v274 = vrot.slane %v273, 2
    %v275 = vadd.f32 %v273, %v274
    %v276 = vrot.slane %v275, 1
    %v277 = vadd.f32 %v275, %v276
    %v278 = vsel %vm149, %v61, 0.0
    %v279 = vadd.f32 %v53, %v278
    %v280 = vrot.slane %v279, 4
    %v281 = vadd.f32 %v279, %v280
    %v282 = vrot.slane %v281, 2
    %v283 = vadd.f32 %v281, %v282
    %v284 = vrot.slane %v283, 1
    %v285 = vadd.f32 %v283, %v284
    %v286 = vsel %vm149, %v62, 0.0
    %v287 = vadd.f32 %v54, %v286
    %v288 = vrot.slane %v287, 4
    %v289 = vadd.f32 %v287, %v288
    %v290 = vrot.slane %v289, 2
    %v291 = vadd.f32 %v289, %v290
    %v292 = vrot.slane %v291, 1
    %v293 = vadd.f32 %v291, %v292
    %v294 = vsel %vm149, %v63, 0.0
    %v295 = vadd.f32 %v55, %v294
    %v296 = vrot.slane %v295, 4
    %v297 = vadd.f32 %v295, %v296
    %v298 = vrot.slane %v297, 2
    %v299 = vadd.f32 %v297, %v298
    %v300 = vrot.slane %v299, 1
    %v301 = vadd.f32 %v299, %v300
    %v302 = vsel %vm149, %v64, 0.0
    %v303 = vadd.f32 %v56, %v302
    %v304 = vrot.slane %v303, 4
    %v305 = vadd.f32 %v303, %v304
    %v306 = vrot.slane %v305, 2
    %v307 = vadd.f32 %v305, %v306
    %v308 = vrot.slane %v307, 1
    %v309 = vadd.f32 %v307, %v308
    %v310 = vsel %vm149, %v65, 0.0
    %v311 = vadd.f32 %v57, %v310
    %v312 = vrot.slane %v311, 4
    %v313 = vadd.f32 %v311, %v312
    %v314 = vrot.slane %v313, 2
    %v315 = vadd.f32 %v313, %v314
    %v316 = vrot.slane %v315, 1
    %v317 = vadd.f32 %v315, %v316
    %v318 = vsel %vm149, %v66, 0.0
    %v319 = vadd.f32 %v58, %v318
    %v320 = vrot.slane %v319, 4
    %v321 = vadd.f32 %v319, %v320
    %v322 = vrot.slane %v321, 2
    %v323 = vadd.f32 %v321, %v322
    %v324 = vrot.slane %v323, 1
    %v325 = vadd.f32 %v323, %v324
    %v326 = vsel %vm149, %v67, 0.0
    %v327 = vadd.f32 %v59, %v326
    %v328 = vrot.slane %v327, 4
    %v329 = vadd.f32 %v327, %v328
    %v330 = vrot.slane %v329, 2
    %v331 = vadd.f32 %v329, %v330
    %v332 = vrot.slane %v331, 1
    %v333 = vadd.f32 %v331, %v332
    %v334 = vsel %vm149, %v68, 0.0
    %v335 = vadd.f32 %v60, %v334
    %v336 = vrot.slane %v335, 4
    %v337 = vadd.f32 %v335, %v336
    %v338 = vrot.slane %v337, 2
    %v339 = vadd.f32 %v337, %v338
    %v340 = vrot.slane %v339, 1
    %v341 = vadd.f32 %v339, %v340
    %v342 = vsel %vm149, %v77, 0.0
    %v343 = vadd.f32 %v69, %v342
    %v344 = vrot.slane %v343, 4
    %v345 = vadd.f32 %v343, %v344
    %v346 = vrot.slane %v345, 2
    %v347 = vadd.f32 %v345, %v346
    %v348 = vrot.slane %v347, 1
    %v349 = vadd.f32 %v347, %v348
    %v350 = vsel %vm149, %v78, 0.0
    %v351 = vadd.f32 %v70, %v350
    %v352 = vrot.slane %v351, 4
    %v353 = vadd.f32 %v351, %v352
    %v354 = vrot.slane %v353, 2
    %v355 = vadd.f32 %v353, %v354
    %v356 = vrot.slane %v355, 1
    %v357 = vadd.f32 %v355, %v356
    %v358 = vsel %vm149, %v79, 0.0
    %v359 = vadd.f32 %v71, %v358
    %v360 = vrot.slane %v359, 4
    %v361 = vadd.f32 %v359, %v360
    %v362 = vrot.slane %v361, 2
    %v363 = vadd.f32 %v361, %v362
    %v364 = vrot.slane %v363, 1
    %v365 = vadd.f32 %v363, %v364
    %v366 = vsel %vm149, %v80, 0.0
    %v367 = vadd.f32 %v72, %v366
    %v368 = vrot.slane %v367, 4
    %v369 = vadd.f32 %v367, %v368
    %v370 = vrot.slane %v369, 2
    %v371 = vadd.f32 %v369, %v370
    %v372 = vrot.slane %v371, 1
    %v373 = vadd.f32 %v371, %v372
    %v374 = vsel %vm149, %v81, 0.0
    %v375 = vadd.f32 %v73, %v374
    %v376 = vrot.slane %v375, 4
    %v377 = vadd.f32 %v375, %v376
    %v378 = vrot.slane %v377, 2
    %v379 = vadd.f32 %v377, %v378
    %v380 = vrot.slane %v379, 1
    %v381 = vadd.f32 %v379, %v380
    %v382 = vsel %vm149, %v82, 0.0
    %v383 = vadd.f32 %v74, %v382
    %v384 = vrot.slane %v383, 4
    %v385 = vadd.f32 %v383, %v384
    %v386 = vrot.slane %v385, 2
    %v387 = vadd.f32 %v385, %v386
    %v388 = vrot.slane %v387, 1
    %v389 = vadd.f32 %v387, %v388
    %v390 = vsel %vm149, %v83, 0.0
    %v391 = vadd.f32 %v75, %v390
    %v392 = vrot.slane %v391, 4
    %v393 = vadd.f32 %v391, %v392
    %v394 = vrot.slane %v393, 2
    %v395 = vadd.f32 %v393, %v394
    %v396 = vrot.slane %v395, 1
    %v397 = vadd.f32 %v395, %v396
    %v398 = vsel %vm149, %v84, 0.0
    %v399 = vadd.f32 %v76, %v398
    %v400 = vrot.slane %v399, 4
    %v401 = vadd.f32 %v399, %v400
    %v402 = vrot.slane %v401, 2
    %v403 = vadd.f32 %v401, %v402
    %v404 = vrot.slane %v403, 1
    %v405 = vadd.f32 %v403, %v404
    %v406 = vsel %vm149, %v93, 0.0
    %v407 = vadd.f32 %v85, %v406
    %v408 = vrot.slane %v407, 4
    %v409 = vadd.f32 %v407, %v408
    %v410 = vrot.slane %v409, 2
    %v411 = vadd.f32 %v409, %v410
    %v412 = vrot.slane %v411, 1
    %v413 = vadd.f32 %v411, %v412
    %v414 = vsel %vm149, %v94, 0.0
    %v415 = vadd.f32 %v86, %v414
    %v416 = vrot.slane %v415, 4
    %v417 = vadd.f32 %v415, %v416
    %v418 = vrot.slane %v417, 2
    %v419 = vadd.f32 %v417, %v418
    %v420 = vrot.slane %v419, 1
    %v421 = vadd.f32 %v419, %v420
    %v422 = vsel %vm149, %v95, 0.0
    %v423 = vadd.f32 %v87, %v422
    %v424 = vrot.slane %v423, 4
    %v425 = vadd.f32 %v423, %v424
    %v426 = vrot.slane %v425, 2
    %v427 = vadd.f32 %v425, %v426
    %v428 = vrot.slane %v427, 1
    %v429 = vadd.f32 %v427, %v428
    %v430 = vsel %vm149, %v96, 0.0
    %v431 = vadd.f32 %v88, %v430
    %v432 = vrot.slane %v431, 4
    %v433 = vadd.f32 %v431, %v432
    %v434 = vrot.slane %v433, 2
    %v435 = vadd.f32 %v433, %v434
    %v436 = vrot.slane %v435, 1
    %v437 = vadd.f32 %v435, %v436
    %v438 = vsel %vm149, %v97, 0.0
    %v439 = vadd.f32 %v89, %v438
    %v440 = vrot.slane %v439, 4
    %v441 = vadd.f32 %v439, %v440
    %v442 = vrot.slane %v441, 2
    %v443 = vadd.f32 %v441, %v442
    %v444 = vrot.slane %v443, 1
    %v445 = vadd.f32 %v443, %v444
    %v446 = vsel %vm149, %v98, 0.0
    %v447 = vadd.f32 %v90, %v446
    %v448 = vrot.slane %v447, 4
    %v449 = vadd.f32 %v447, %v448
    %v450 = vrot.slane %v449, 2
    %v451 = vadd.f32 %v449, %v450
    %v452 = vrot.slane %v451, 1
    %v453 = vadd.f32 %v451, %v452
    %v454 = vsel %vm149, %v99, 0.0
    %v455 = vadd.f32 %v91, %v454
    %v456 = vrot.slane %v455, 4
    %v457 = vadd.f32 %v455, %v456
    %v458 = vrot.slane %v457, 2
    %v459 = vadd.f32 %v457, %v458
    %v460 = vrot.slane %v459, 1
    %v461 = vadd.f32 %v459, %v460
    %v462 = vsel %vm149, %v100, 0.0
    %v463 = vadd.f32 %v92, %v462
    %v464 = vrot.slane %v463, 4
    %v465 = vadd.f32 %v463, %v464
    %v466 = vrot.slane %v465, 2
    %v467 = vadd.f32 %v465, %v466
    %v468 = vrot.slane %v467, 1
    %v469 = vadd.f32 %v467, %v468
    %v470 = vsel %vm149, %v109, 0.0
    %v471 = vadd.f32 %v101, %v470
    %v472 = vrot.slane %v471, 4
    %v473 = vadd.f32 %v471, %v472
    %v474 = vrot.slane %v473, 2
    %v475 = vadd.f32 %v473, %v474
    %v476 = vrot.slane %v475, 1
    %v477 = vadd.f32 %v475, %v476
    %v478 = vsel %vm149, %v110, 0.0
    %v479 = vadd.f32 %v102, %v478
    %v480 = vrot.slane %v479, 4
    %v481 = vadd.f32 %v479, %v480
    %v482 = vrot.slane %v481, 2
    %v483 = vadd.f32 %v481, %v482
    %v484 = vrot.slane %v483, 1
    %v485 = vadd.f32 %v483, %v484
    %v486 = vsel %vm149, %v111, 0.0
    %v487 = vadd.f32 %v103, %v486
    %v488 = vrot.slane %v487, 4
    %v489 = vadd.f32 %v487, %v488
    %v490 = vrot.slane %v489, 2
    %v491 = vadd.f32 %v489, %v490
    %v492 = vrot.slane %v491, 1
    %v493 = vadd.f32 %v491, %v492
    %v494 = vsel %vm149, %v112, 0.0
    %v495 = vadd.f32 %v104, %v494
    %v496 = vrot.slane %v495, 4
    %v497 = vadd.f32 %v495, %v496
    %v498 = vrot.slane %v497, 2
    %v499 = vadd.f32 %v497, %v498
    %v500 = vrot.slane %v499, 1
    %v501 = vadd.f32 %v499, %v500
    %v502 = vsel %vm149, %v113, 0.0
    %v503 = vadd.f32 %v105, %v502
    %v504 = vrot.slane %v503, 4
    %v505 = vadd.f32 %v503, %v504
    %v506 = vrot.slane %v505, 2
    %v507 = vadd.f32 %v505, %v506
    %v508 = vrot.slane %v507, 1
    %v509 = vadd.f32 %v507, %v508
    %v510 = vsel %vm149, %v114, 0.0
    %v511 = vadd.f32 %v106, %v510
    %v512 = vrot.slane %v511, 4
    %v513 = vadd.f32 %v511, %v512
    %v514 = vrot.slane %v513, 2
    %v515 = vadd.f32 %v513, %v514
    %v516 = vrot.slane %v515, 1
    %v517 = vadd.f32 %v515, %v516
    %v518 = vsel %vm149, %v115, 0.0
    %v519 = vadd.f32 %v107, %v518
    %v520 = vrot.slane %v519, 4
    %v521 = vadd.f32 %v519, %v520
    %v522 = vrot.slane %v521, 2
    %v523 = vadd.f32 %v521, %v522
    %v524 = vrot.slane %v523, 1
    %v525 = vadd.f32 %v523, %v524
    %v526 = vsel %vm149, %v116, 0.0
    %v527 = vadd.f32 %v108, %v526
    %v528 = vrot.slane %v527, 4
    %v529 = vadd.f32 %v527, %v528
    %v530 = vrot.slane %v529, 2
    %v531 = vadd.f32 %v529, %v530
    %v532 = vrot.slane %v531, 1
    %v533 = vadd.f32 %v531, %v532
    %v534 = vsel %vm149, %v125, 0.0
    %v535 = vadd.f32 %v117, %v534
    %v536 = vrot.slane %v535, 4
    %v537 = vadd.f32 %v535, %v536
    %v538 = vrot.slane %v537, 2
    %v539 = vadd.f32 %v537, %v538
    %v540 = vrot.slane %v539, 1
    %v541 = vadd.f32 %v539, %v540
    %v542 = vsel %vm149, %v126, 0.0
    %v543 = vadd.f32 %v118, %v542
    %v544 = vrot.slane %v543, 4
    %v545 = vadd.f32 %v543, %v544
    %v546 = vrot.slane %v545, 2
    %v547 = vadd.f32 %v545, %v546
    %v548 = vrot.slane %v547, 1
    %v549 = vadd.f32 %v547, %v548
    %v550 = vsel %vm149, %v127, 0.0
    %v551 = vadd.f32 %v119, %v550
    %v552 = vrot.slane %v551, 4
    %v553 = vadd.f32 %v551, %v552
    %v554 = vrot.slane %v553, 2
    %v555 = vadd.f32 %v553, %v554
    %v556 = vrot.slane %v555, 1
    %v557 = vadd.f32 %v555, %v556
    %v558 = vsel %vm149, %v128, 0.0
    %v559 = vadd.f32 %v120, %v558
    %v560 = vrot.slane %v559, 4
    %v561 = vadd.f32 %v559, %v560
    %v562 = vrot.slane %v561, 2
    %v563 = vadd.f32 %v561, %v562
    %v564 = vrot.slane %v563, 1
    %v565 = vadd.f32 %v563, %v564
    %v566 = vsel %vm149, %v129, 0.0
    %v567 = vadd.f32 %v121, %v566
    %v568 = vrot.slane %v567, 4
    %v569 = vadd.f32 %v567, %v568
    %v570 = vrot.slane %v569, 2
    %v571 = vadd.f32 %v569, %v570
    %v572 = vrot.slane %v571, 1
    %v573 = vadd.f32 %v571, %v572
    %v574 = vsel %vm149, %v130, 0.0
    %v575 = vadd.f32 %v122, %v574
    %v576 = vrot.slane %v575, 4
    %v577 = vadd.f32 %v575, %v576
    %v578 = vrot.slane %v577, 2
    %v579 = vadd.f32 %v577, %v578
    %v580 = vrot.slane %v579, 1
    %v581 = vadd.f32 %v579, %v580
    %v582 = vsel %vm149, %v131, 0.0
    %v583 = vadd.f32 %v123, %v582
    %v584 = vrot.slane %v583, 4
    %v585 = vadd.f32 %v583, %v584
    %v586 = vrot.slane %v585, 2
    %v587 = vadd.f32 %v585, %v586
    %v588 = vrot.slane %v587, 1
    %v589 = vadd.f32 %v587, %v588
    %v590 = vsel %vm149, %v132, 0.0
    %v591 = vadd.f32 %v124, %v590
    %v592 = vrot.slane %v591, 4
    %v593 = vadd.f32 %v591, %v592
    %v594 = vrot.slane %v593, 2
    %v595 = vadd.f32 %v593, %v594
    %v596 = vrot.slane %v595, 1
    %v597 = vadd.f32 %v595, %v596
    %v598 = vsel %vm149, %v141, 0.0
    %v599 = vadd.f32 %v133, %v598
    %v600 = vrot.slane %v599, 4
    %v601 = vadd.f32 %v599, %v600
    %v602 = vrot.slane %v601, 2
    %v603 = vadd.f32 %v601, %v602
    %v604 = vrot.slane %v603, 1
    %v605 = vadd.f32 %v603, %v604
    %v606 = vsel %vm149, %v142, 0.0
    %v607 = vadd.f32 %v134, %v606
    %v608 = vrot.slane %v607, 4
    %v609 = vadd.f32 %v607, %v608
    %v610 = vrot.slane %v609, 2
    %v611 = vadd.f32 %v609, %v610
    %v612 = vrot.slane %v611, 1
    %v613 = vadd.f32 %v611, %v612
    %v614 = vsel %vm149, %v143, 0.0
    %v615 = vadd.f32 %v135, %v614
    %v616 = vrot.slane %v615, 4
    %v617 = vadd.f32 %v615, %v616
    %v618 = vrot.slane %v617, 2
    %v619 = vadd.f32 %v617, %v618
    %v620 = vrot.slane %v619, 1
    %v621 = vadd.f32 %v619, %v620
    %v622 = vsel %vm149, %v144, 0.0
    %v623 = vadd.f32 %v136, %v622
    %v624 = vrot.slane %v623, 4
    %v625 = vadd.f32 %v623, %v624
    %v626 = vrot.slane %v625, 2
    %v627 = vadd.f32 %v625, %v626
    %v628 = vrot.slane %v627, 1
    %v629 = vadd.f32 %v627, %v628
    %v630 = vsel %vm149, %v145, 0.0
    %v631 = vadd.f32 %v137, %v630
    %v632 = vrot.slane %v631, 4
    %v633 = vadd.f32 %v631, %v632
    %v634 = vrot.slane %v633, 2
    %v635 = vadd.f32 %v633, %v634
    %v636 = vrot.slane %v635, 1
    %v637 = vadd.f32 %v635, %v636
    %v638 = vsel %vm149, %v146, 0.0
    %v639 = vadd.f32 %v138, %v638
    %v640 = vrot.slane %v639, 4
    %v641 = vadd.f32 %v639, %v640
    %v642 = vrot.slane %v641, 2
    %v643 = vadd.f32 %v641, %v642
    %v644 = vrot.slane %v643, 1
    %v645 = vadd.f32 %v643, %v644
    %v646 = vsel %vm149, %v147, 0.0
    %v647 = vadd.f32 %v139, %v646
    %v648 = vrot.slane %v647, 4
    %v649 = vadd.f32 %v647, %v648
    %v650 = vrot.slane %v649, 2
    %v651 = vadd.f32 %v649, %v650
    %v652 = vrot.slane %v651, 1
    %v653 = vadd.f32 %v651, %v652
    %v654 = vsel %vm149, %v148, 0.0
    %v655 = vadd.f32 %v140, %v654
    %v656 = vrot.slane %v655, 4
    %v657 = vadd.f32 %v655, %v656
    %v658 = vrot.slane %v657, 2
    %v659 = vadd.f32 %v657, %v658
    %v660 = vrot.slane %v659, 1
    %v661 = vadd.f32 %v659, %v660
    %v662 = vmul.f32 %v157, 0.1
    %v663 = vmul.f32 %v165, 0.1
    %v664 = vmul.f32 %v173, 0.1
    %v665 = vmul.f32 %v181, 0.1
    %v666 = vmul.f32 %v189, 0.1
    %v667 = vmul.f32 %v197, 0.1
    %v668 = vmul.f32 %v205, 0.1
    %v669 = vmul.f32 %v213, 0.1
    %v670 = vmul.f32 %v221, 0.1
    %v671 = vmul.f32 %v229, 0.1
    %v672 = vmul.f32 %v237, 0.1
    %v673 = vmul.f32 %v245, 0.1
    %v674 = vmul.f32 %v253, 0.1
    %v675 = vmul.f32 %v261, 0.1
    %v676 = vmul.f32 %v269, 0.1
    %v677 = vmul.f32 %v277, 0.1
    %v678 = vmul.f32 %v285, 0.1
    %v679 = vmul.f32 %v293, 0.1
    %v680 = vmul.f32 %v301, 0.1
    %v681 = vmul.f32 %v309, 0.1
    %v682 = vmul.f32 %v317, 0.1
    %v683 = vmul.f32 %v325, 0.1
    %v684 = vmul.f32 %v333, 0.1
    %v685 = vmul.f32 %v341, 0.1
    %v686 = vmul.f32 %v349, 0.1
    %v687 = vmul.f32 %v357, 0.1
    %v688 = vmul.f32 %v365, 0.1
    %v689 = vmul.f32 %v373, 0.1
    %v690 = vmul.f32 %v381, 0.1
    %v691 = vmul.f32 %v389, 0.1
    %v692 = vmul.f32 %v397, 0.1
    %v693 = vmul.f32 %v405, 0.1
    %v694 = vmul.f32 %v413, 0.1
    %v695 = vmul.f32 %v421, 0.1
    %v696 = vmul.f32 %v429, 0.1
    %v697 = vmul.f32 %v437, 0.1
    %v698 = vmul.f32 %v445, 0.1
    %v699 = vmul.f32 %v453, 0.1
    %v700 = vmul.f32 %v461, 0.1
    %v701 = vmul.f32 %v469, 0.1
    %v702 = vmul.f32 %v477, 0.1
    %v703 = vmul.f32 %v485, 0.1
    %v704 = vmul.f32 %v493, 0.1
    %v705 = vmul.f32 %v501, 0.1
    %v706 = vmul.f32 %v509, 0.1
    %v707 = vmul.f32 %v517, 0.1
    %v708 = vmul.f32 %v525, 0.1
    %v709 = vmul.f32 %v533, 0.1
    %v710 = vmul.f32 %v541, 0.1
    %v711 = vmul.f32 %v549, 0.1
    %v712 = vmul.f32 %v557, 0.1
    %v713 = vmul.f32 %v565, 0.1
    %v714 = vmul.f32 %v573, 0.1
    %v715 = vmul.f32 %v581, 0.1
    %v716 = vmul.f32 %v589, 0.1
    %v717 = vmul.f32 %v597, 0.1
    %v718 = vmul.f32 %v605, 0.1
    %v719 = vmul.f32 %v613, 0.1
    %v720 = vmul.f32 %v621, 0.1
    %v721 = vmul.f32 %v629, 0.1
    %v722 = vmul.f32 %v637, 0.1
    %v723 = vmul.f32 %v645, 0.1
    %v724 = vmul.f32 %v653, 0.1
    %v725 = vmul.f32 %v661, 0.1
    %v726 = vld [vmem:[%s0] sm:$0xff]
    %v727 = vld [vmem:[%s0 + $0x8] sm:$0xff]
    %v728 = vld [vmem:[%s0 + $0x10] sm:$0xff]
    %v729 = vld [vmem:[%s0 + $0x18] sm:$0xff]
    %v730 = vld [vmem:[%s0 + $0x20] sm:$0xff]
    %v731 = vld [vmem:[%s0 + $0x28] sm:$0xff]
    %v732 = vld [vmem:[%s0 + $0x30] sm:$0xff]
    %v733 = vld [vmem:[%s0 + $0x38] sm:$0xff]
    %v734 = vld [vmem:[%s2] sm:$0xff]
    %v736 = vlaneseq
    %v737 = vshrl.u32 %v736, 7
    %v738 = vsub.s32 0, %v737
    %v739 = vrot.slane %v734, %v738
    %v740 = vlaneseq
    %v741 = vshrl.u32 %v740, 7
    %v742 = vsub.s32 1, %v741
    %v743 = vrot.slane %v734, %v742
    %v744 = vlaneseq
    %v745 = vshrl.u32 %v744, 7
    %v746 = vsub.s32 2, %v745
    %v747 = vrot.slane %v734, %v746
    %v748 = vlaneseq
    %v749 = vshrl.u32 %v748, 7
    %v750 = vsub.s32 3, %v749
    %v751 = vrot.slane %v734, %v750
    %v752 = vlaneseq
    %v753 = vshrl.u32 %v752, 7
    %v754 = vsub.s32 4, %v753
    %v755 = vrot.slane %v734, %v754
    %v756 = vlaneseq
    %v757 = vshrl.u32 %v756, 7
    %v758 = vsub.s32 5, %v757
    %v759 = vrot.slane %v734, %v758
    %v760 = vlaneseq
    %v761 = vshrl.u32 %v760, 7
    %v762 = vsub.s32 6, %v761
    %v763 = vrot.slane %v734, %v762
    %v764 = vlaneseq
    %v765 = vshrl.u32 %v764, 7
    %v766 = vsub.s32 7, %v765
    %v767 = vrot.slane %v734, %v766
    %v776 = vmul.f32 %v662, %v739
    %v777 = vmul.f32 %v663, %v743
    %v778 = vmul.f32 %v664, %v747
    %v779 = vmul.f32 %v665, %v751
    %v780 = vmul.f32 %v666, %v755
    %v781 = vmul.f32 %v667, %v759
    %v782 = vmul.f32 %v668, %v763
    %v783 = vmul.f32 %v669, %v767
    %v784 = vmul.f32 %v670, %v739
    %v785 = vmul.f32 %v671, %v743
    %v786 = vmul.f32 %v672, %v747
    %v787 = vmul.f32 %v673, %v751
    %v788 = vmul.f32 %v674, %v755
    %v789 = vmul.f32 %v675, %v759
    %v790 = vmul.f32 %v676, %v763
    %v791 = vmul.f32 %v677, %v767
    %v792 = vmul.f32 %v678, %v739
    %v793 = vmul.f32 %v679, %v743
    %v794 = vmul.f32 %v680, %v747
    %v795 = vmul.f32 %v681, %v751
    %v796 = vmul.f32 %v682, %v755
    %v797 = vmul.f32 %v683, %v759
    %v798 = vmul.f32 %v684, %v763
    %v799 = vmul.f32 %v685, %v767
    %v800 = vmul.f32 %v686, %v739
    %v801 = vmul.f32 %v687, %v743
    %v802 = vmul.f32 %v688, %v747
    %v803 = vmul.f32 %v689, %v751
    %v804 = vmul.f32 %v690, %v755
    %v805 = vmul.f32 %v691, %v759
    %v806 = vmul.f32 %v692, %v763
    %v807 = vmul.f32 %v693, %v767
    %v808 = vmul.f32 %v694, %v739
    %v809 = vmul.f32 %v695, %v743
    %v810 = vmul.f32 %v696, %v747
    %v811 = vmul.f32 %v697, %v751
    %v812 = vmul.f32 %v698, %v755
    %v813 = vmul.f32 %v699, %v759
    %v814 = vmul.f32 %v700, %v763
    %v815 = vmul.f32 %v701, %v767
    %v816 = vmul.f32 %v702, %v739
    %v817 = vmul.f32 %v703, %v743
    %v818 = vmul.f32 %v704, %v747
    %v819 = vmul.f32 %v705, %v751
    %v820 = vmul.f32 %v706, %v755
    %v821 = vmul.f32 %v707, %v759
    %v822 = vmul.f32 %v708, %v763
    %v823 = vmul.f32 %v709, %v767
    %v824 = vmul.f32 %v710, %v739
    %v825 = vmul.f32 %v711, %v743
    %v826 = vmul.f32 %v712, %v747
    %v827 = vmul.f32 %v713, %v751
    %v828 = vmul.f32 %v714, %v755
    %v829 = vmul.f32 %v715, %v759
    %v830 = vmul.f32 %v716, %v763
    %v831 = vmul.f32 %v717, %v767
    %v832 = vmul.f32 %v718, %v739
    %v833 = vmul.f32 %v719, %v743
    %v834 = vmul.f32 %v720, %v747
    %v835 = vmul.f32 %v721, %v751
    %v836 = vmul.f32 %v722, %v755
    %v837 = vmul.f32 %v723, %v759
    %v838 = vmul.f32 %v724, %v763
    %v839 = vmul.f32 %v725, %v767
    %v904 = vrot.slane %v784, 7
    %vm905 = vcmask 1041409
    %v906 = vsel %vm905, %v904, %v776
    %v907 = vrot.slane %v792, 6
    %vm908 = vcmask 1042434
    %v909 = vsel %vm908, %v907, %v906
    %v910 = vrot.slane %v800, 5
    %vm911 = vcmask 1043459
    %v912 = vsel %vm911, %v910, %v909
    %v913 = vrot.slane %v808, 4
    %vm914 = vcmask 1044484
    %v915 = vsel %vm914, %v913, %v912
    %v916 = vrot.slane %v816, 3
    %vm917 = vcmask 1045509
    %v918 = vsel %vm917, %v916, %v915
    %v919 = vrot.slane %v824, 2
    %vm920 = vcmask 1046534
    %v921 = vsel %vm920, %v919, %v918
    %v922 = vrot.slane %v832, 1
    %vm923 = vcmask 1047559
    %v924 = vsel %vm923, %v922, %v921
    %v925 = vrot.slane %v785, 7
    %v926 = vsel %vm905, %v925, %v777
    %v927 = vrot.slane %v793, 6
    %v928 = vsel %vm908, %v927, %v926
    %v929 = vrot.slane %v801, 5
    %v930 = vsel %vm911, %v929, %v928
    %v931 = vrot.slane %v809, 4
    %v932 = vsel %vm914, %v931, %v930
    %v933 = vrot.slane %v817, 3
    %v934 = vsel %vm917, %v933, %v932
    %v935 = vrot.slane %v825, 2
    %v936 = vsel %vm920, %v935, %v934
    %v937 = vrot.slane %v833, 1
    %v938 = vsel %vm923, %v937, %v936
    %v939 = vrot.slane %v786, 7
    %v940 = vsel %vm905, %v939, %v778
    %v941 = vrot.slane %v794, 6
    %v942 = vsel %vm908, %v941, %v940
    %v943 = vrot.slane %v802, 5
    %v944 = vsel %vm911, %v943, %v942
    %v945 = vrot.slane %v810, 4
    %v946 = vsel %vm914, %v945, %v944
    %v947 = vrot.slane %v818, 3
    %v948 = vsel %vm917, %v947, %v946
    %v949 = vrot.slane %v826, 2
    %v950 = vsel %vm920, %v949, %v948
    %v951 = vrot.slane %v834, 1
    %v952 = vsel %vm923, %v951, %v950
    %v953 = vrot.slane %v787, 7
    %v954 = vsel %vm905, %v953, %v779
    %v955 = vrot.slane %v795, 6
    %v956 = vsel %vm908, %v955, %v954
    %v957 = vrot.slane %v803, 5
    %v958 = vsel %vm911, %v957, %v956
    %v959 = vrot.slane %v811, 4
    %v960 = vsel %vm914, %v959, %v958
    %v961 = vrot.slane %v819, 3
    %v962 = vsel %vm917, %v961, %v960
    %v963 = vrot.slane %v827, 2
    %v964 = vsel %vm920, %v963, %v962
    %v965 = vrot.slane %v835, 1
    %v966 = vsel %vm923, %v965, %v964
    %v967 = vrot.slane %v788, 7
    %v968 = vsel %vm905, %v967, %v780
    %v969 = vrot.slane %v796, 6
    %v970 = vsel %vm908, %v969, %v968
    %v971 = vrot.slane %v804, 5
    %v972 = vsel %vm911, %v971, %v970
    %v973 = vrot.slane %v812, 4
    %v974 = vsel %vm914, %v973, %v972
    %v975 = vrot.slane %v820, 3
    %v976 = vsel %vm917, %v975, %v974
    %v977 = vrot.slane %v828, 2
    %v978 = vsel %vm920, %v977, %v976
    %v979 = vrot.slane %v836, 1
    %v980 = vsel %vm923, %v979, %v978
    %v981 = vrot.slane %v789, 7
    %v982 = vsel %vm905, %v981, %v781
    %v983 = vrot.slane %v797, 6
    %v984 = vsel %vm908, %v983, %v982
    %v985 = vrot.slane %v805, 5
    %v986 = vsel %vm911, %v985, %v984
    %v987 = vrot.slane %v813, 4
    %v988 = vsel %vm914, %v987, %v986
    %v989 = vrot.slane %v821, 3
    %v990 = vsel %vm917, %v989, %v988
    %v991 = vrot.slane %v829, 2
    %v992 = vsel %vm920, %v991, %v990
    %v993 = vrot.slane %v837, 1
    %v994 = vsel %vm923, %v993, %v992
    %v995 = vrot.slane %v790, 7
    %v996 = vsel %vm905, %v995, %v782
    %v997 = vrot.slane %v798, 6
    %v998 = vsel %vm908, %v997, %v996
    %v999 = vrot.slane %v806, 5
    %v1000 = vsel %vm911, %v999, %v998
    %v1001 = vrot.slane %v814, 4
    %v1002 = vsel %vm914, %v1001, %v1000
    %v1003 = vrot.slane %v822, 3
    %v1004 = vsel %vm917, %v1003, %v1002
    %v1005 = vrot.slane %v830, 2
    %v1006 = vsel %vm920, %v1005, %v1004
    %v1007 = vrot.slane %v838, 1
    %v1008 = vsel %vm923, %v1007, %v1006
    %v1009 = vrot.slane %v791, 7
    %v1010 = vsel %vm905, %v1009, %v783
    %v1011 = vrot.slane %v799, 6
    %v1012 = vsel %vm908, %v1011, %v1010
    %v1013 = vrot.slane %v807, 5
    %v1014 = vsel %vm911, %v1013, %v1012
    %v1015 = vrot.slane %v815, 4
    %v1016 = vsel %vm914, %v1015, %v1014
    %v1017 = vrot.slane %v823, 3
    %v1018 = vsel %vm917, %v1017, %v1016
    %v1019 = vrot.slane %v831, 2
    %v1020 = vsel %vm920, %v1019, %v1018
    %v1021 = vrot.slane %v839, 1
    %v1022 = vsel %vm923, %v1021, %v1020
    %v1031 = vadd.f32 %v726, %v924
    %v1032 = vadd.f32 %v727, %v938
    %v1033 = vadd.f32 %v728, %v952
    %v1034 = vadd.f32 %v729, %v966
    %v1035 = vadd.f32 %v730, %v980
    %v1036 = vadd.f32 %v731, %v994
    %v1037 = vadd.f32 %v732, %v1008
    %v1038 = vadd.f32 %v733, %v1022
    %v1039 = vld [vmem:[%s3] sm:$0xff]
    %v1040 = vld [vmem:[%s3 + $0x8] sm:$0xff]
    %v1041 = vld [vmem:[%s3 + $0x10] sm:$0xff]
    %v1042 = vld [vmem:[%s3 + $0x18] sm:$0xff]
    %v1043 = vld [vmem:[%s3 + $0x20] sm:$0xff]
    %v1044 = vld [vmem:[%s3 + $0x28] sm:$0xff]
    %v1045 = vld [vmem:[%s3 + $0x30] sm:$0xff]
    %v1046 = vld [vmem:[%s3 + $0x38] sm:$0xff]
    %v1047 = vld [vmem:[%s3 + $0x40] sm:$0xff]
    %v1048 = vld [vmem:[%s3 + $0x48] sm:$0xff]
    %v1049 = vld [vmem:[%s3 + $0x50] sm:$0xff]
    %v1050 = vld [vmem:[%s3 + $0x58] sm:$0xff]
    %v1051 = vld [vmem:[%s3 + $0x60] sm:$0xff]
    %v1052 = vld [vmem:[%s3 + $0x68] sm:$0xff]
    %v1053 = vld [vmem:[%s3 + $0x70] sm:$0xff]
    %v1054 = vld [vmem:[%s3 + $0x78] sm:$0xff]
    %v1055 = vld [vmem:[%s3 + $0x80] sm:$0xff]
    %v1056 = vld [vmem:[%s3 + $0x88] sm:$0xff]
    %v1057 = vld [vmem:[%s3 + $0x90] sm:$0xff]
    %v1058 = vld [vmem:[%s3 + $0x98] sm:$0xff]
    %v1059 = vld [vmem:[%s3 + $0xa0] sm:$0xff]
    %v1060 = vld [vmem:[%s3 + $0xa8] sm:$0xff]
    %v1061 = vld [vmem:[%s3 + $0xb0] sm:$0xff]
    %v1062 = vld [vmem:[%s3 + $0xb8] sm:$0xff]
    %v1063 = vld [vmem:[%s3 + $0xc0] sm:$0xff]
    %v1064 = vld [vmem:[%s3 + $0xc8] sm:$0xff]
    %v1065 = vld [vmem:[%s3 + $0xd0] sm:$0xff]
    %v1066 = vld [vmem:[%s3 + $0xd8] sm:$0xff]
    %v1067 = vld [vmem:[%s3 + $0xe0] sm:$0xff]
    %v1068 = vld [vmem:[%s3 + $0xe8] sm:$0xff]
    %v1069 = vld [vmem:[%s3 + $0xf0] sm:$0xff]
    %v1070 = vld [vmem:[%s3 + $0xf8] sm:$0xff]
    %v1071 = vld [vmem:[%s3 + $0x100] sm:$0xff]
    %v1072 = vld [vmem:[%s3 + $0x108] sm:$0xff]
    %v1073 = vld [vmem:[%s3 + $0x110] sm:$0xff]
    %v1074 = vld [vmem:[%s3 + $0x118] sm:$0xff]
    %v1075 = vld [vmem:[%s3 + $0x120] sm:$0xff]
    %v1076 = vld [vmem:[%s3 + $0x128] sm:$0xff]
    %v1077 = vld [vmem:[%s3 + $0x130] sm:$0xff]
    %v1078 = vld [vmem:[%s3 + $0x138] sm:$0xff]
    %v1079 = vld [vmem:[%s3 + $0x140] sm:$0xff]
    %v1080 = vld [vmem:[%s3 + $0x148] sm:$0xff]
    %v1081 = vld [vmem:[%s3 + $0x150] sm:$0xff]
    %v1082 = vld [vmem:[%s3 + $0x158] sm:$0xff]
    %v1083 = vld [vmem:[%s3 + $0x160] sm:$0xff]
    %v1084 = vld [vmem:[%s3 + $0x168] sm:$0xff]
    %v1085 = vld [vmem:[%s3 + $0x170] sm:$0xff]
    %v1086 = vld [vmem:[%s3 + $0x178] sm:$0xff]
    %v1087 = vld [vmem:[%s3 + $0x180] sm:$0xff]
    %v1088 = vld [vmem:[%s3 + $0x188] sm:$0xff]
    %v1089 = vld [vmem:[%s3 + $0x190] sm:$0xff]
    %v1090 = vld [vmem:[%s3 + $0x198] sm:$0xff]
    %v1091 = vld [vmem:[%s3 + $0x1a0] sm:$0xff]
    %v1092 = vld [vmem:[%s3 + $0x1a8] sm:$0xff]
    %v1093 = vld [vmem:[%s3 + $0x1b0] sm:$0xff]
    %v1094 = vld [vmem:[%s3 + $0x1b8] sm:$0xff]
    %v1095 = vld [vmem:[%s3 + $0x1c0] sm:$0xff]
    %v1096 = vld [vmem:[%s3 + $0x1c8] sm:$0xff]
    %v1097 = vld [vmem:[%s3 + $0x1d0] sm:$0xff]
    %v1098 = vld [vmem:[%s3 + $0x1d8] sm:$0xff]
    %v1099 = vld [vmem:[%s3 + $0x1e0] sm:$0xff]
    %v1100 = vld [vmem:[%s3 + $0x1e8] sm:$0xff]
    %v1101 = vld [vmem:[%s3 + $0x1f0] sm:$0xff]
    %v1102 = vld [vmem:[%s3 + $0x1f8] sm:$0xff]
    %v1103 = vld [vmem:[%s3 + $0x200] sm:$0xff]
    %v1104 = vld [vmem:[%s3 + $0x208] sm:$0xff]
    %v1105 = vld [vmem:[%s3 + $0x210] sm:$0xff]
    %v1106 = vld [vmem:[%s3 + $0x218] sm:$0xff]
    %v1107 = vld [vmem:[%s3 + $0x220] sm:$0xff]
    %v1108 = vld [vmem:[%s3 + $0x228] sm:$0xff]
    %v1109 = vld [vmem:[%s3 + $0x230] sm:$0xff]
    %v1110 = vld [vmem:[%s3 + $0x238] sm:$0xff]
    %v1111 = vld [vmem:[%s3 + $0x240] sm:$0xff]
    %v1112 = vld [vmem:[%s3 + $0x248] sm:$0xff]
    %v1113 = vld [vmem:[%s3 + $0x250] sm:$0xff]
    %v1114 = vld [vmem:[%s3 + $0x258] sm:$0xff]
    %v1115 = vld [vmem:[%s3 + $0x260] sm:$0xff]
    %v1116 = vld [vmem:[%s3 + $0x268] sm:$0xff]
    %v1117 = vld [vmem:[%s3 + $0x270] sm:$0xff]
    %v1118 = vld [vmem:[%s3 + $0x278] sm:$0xff]
    %v1119 = vld [vmem:[%s3 + $0x280] sm:$0xff]
    %v1120 = vld [vmem:[%s3 + $0x288] sm:$0xff]
    %v1121 = vld [vmem:[%s3 + $0x290] sm:$0xff]
    %v1122 = vld [vmem:[%s3 + $0x298] sm:$0xff]
    %v1123 = vld [vmem:[%s3 + $0x2a0] sm:$0xff]
    %v1124 = vld [vmem:[%s3 + $0x2a8] sm:$0xff]
    %v1125 = vld [vmem:[%s3 + $0x2b0] sm:$0xff]
    %v1126 = vld [vmem:[%s3 + $0x2b8] sm:$0xff]
    %v1127 = vld [vmem:[%s3 + $0x2c0] sm:$0xff]
    %v1128 = vld [vmem:[%s3 + $0x2c8] sm:$0xff]
    %v1129 = vld [vmem:[%s3 + $0x2d0] sm:$0xff]
    %v1130 = vld [vmem:[%s3 + $0x2d8] sm:$0xff]
    %v1131 = vld [vmem:[%s3 + $0x2e0] sm:$0xff]
    %v1132 = vld [vmem:[%s3 + $0x2e8] sm:$0xff]
    %v1133 = vld [vmem:[%s3 + $0x2f0] sm:$0xff]
    %v1134 = vld [vmem:[%s3 + $0x2f8] sm:$0xff]
    %v1135 = vld [vmem:[%s3 + $0x300] sm:$0xff]
    %v1136 = vld [vmem:[%s3 + $0x308] sm:$0xff]
    %v1137 = vld [vmem:[%s3 + $0x310] sm:$0xff]
    %v1138 = vld [vmem:[%s3 + $0x318] sm:$0xff]
    %v1139 = vld [vmem:[%s3 + $0x320] sm:$0xff]
    %v1140 = vld [vmem:[%s3 + $0x328] sm:$0xff]
    %v1141 = vld [vmem:[%s3 + $0x330] sm:$0xff]
    %v1142 = vld [vmem:[%s3 + $0x338] sm:$0xff]
    %v1143 = vld [vmem:[%s3 + $0x340] sm:$0xff]
    %v1144 = vld [vmem:[%s3 + $0x348] sm:$0xff]
    %v1145 = vld [vmem:[%s3 + $0x350] sm:$0xff]
    %v1146 = vld [vmem:[%s3 + $0x358] sm:$0xff]
    %v1147 = vld [vmem:[%s3 + $0x360] sm:$0xff]
    %v1148 = vld [vmem:[%s3 + $0x368] sm:$0xff]
    %v1149 = vld [vmem:[%s3 + $0x370] sm:$0xff]
    %v1150 = vld [vmem:[%s3 + $0x378] sm:$0xff]
    %v1151 = vld [vmem:[%s3 + $0x380] sm:$0xff]
    %v1152 = vld [vmem:[%s3 + $0x388] sm:$0xff]
    %v1153 = vld [vmem:[%s3 + $0x390] sm:$0xff]
    %v1154 = vld [vmem:[%s3 + $0x398] sm:$0xff]
    %v1155 = vld [vmem:[%s3 + $0x3a0] sm:$0xff]
    %v1156 = vld [vmem:[%s3 + $0x3a8] sm:$0xff]
    %v1157 = vld [vmem:[%s3 + $0x3b0] sm:$0xff]
    %v1158 = vld [vmem:[%s3 + $0x3b8] sm:$0xff]
    %v1159 = vld [vmem:[%s3 + $0x3c0] sm:$0xff]
    %v1160 = vld [vmem:[%s3 + $0x3c8] sm:$0xff]
    %v1161 = vld [vmem:[%s3 + $0x3d0] sm:$0xff]
    %v1162 = vld [vmem:[%s3 + $0x3d8] sm:$0xff]
    %v1163 = vld [vmem:[%s3 + $0x3e0] sm:$0xff]
    %v1164 = vld [vmem:[%s3 + $0x3e8] sm:$0xff]
    %v1165 = vld [vmem:[%s3 + $0x3f0] sm:$0xff]
    %v1166 = vld [vmem:[%s3 + $0x3f8] sm:$0xff]
    %v1167 = vld [vmem:[%s4] sm:$0x1]
    %v1169 = vlaneseq
    %v1170 = vshrl.u32 %v1169, 7
    %v1171 = vsub.s32 0, %v1170
    %v1172 = vrot.slane %v1167, %v1171
    %1174 = vmatprep.subr.mxu0 0.0
    %1175 = vmatpush1.msra.mxu0 %v1054
    %1176 = vmatprep.subr.mxu0 0.0
    %1177 = vmatpush1.msra.mxu0 %v1053
    %1178 = vmatprep.subr.mxu0 0.0
    %1179 = vmatpush1.msra.mxu0 %v1052
    %1180 = vmatprep.subr.mxu0 0.0
    %1181 = vmatpush1.msra.mxu0 %v1051
    %1182 = vmatprep.subr.mxu0 0.0
    %1183 = vmatpush1.msra.mxu0 %v1050
    %1184 = vmatprep.subr.mxu0 0.0
    %1185 = vmatpush1.msra.mxu0 %v1049
    %1186 = vmatprep.subr.mxu0 0.0
    %1187 = vmatpush1.msra.mxu0 %v1048
    %1188 = vmatprep.subr.mxu0 0.0
    %1189 = vmatpush1.msra.mxu0 %v1047
    %1190 = vmatprep.subr.mxu0 0.0
    %1191 = vmatpush1.msra.mxu0 %v1046
    %1192 = vmatprep.subr.mxu0 0.0
    %1193 = vmatpush1.msra.mxu0 %v1045
    %1194 = vmatprep.subr.mxu0 0.0
    %1195 = vmatpush1.msra.mxu0 %v1044
    %1196 = vmatprep.subr.mxu0 0.0
    %1197 = vmatpush1.msra.mxu0 %v1043
    %1198 = vmatprep.subr.mxu0 0.0
    %1199 = vmatpush1.msra.mxu0 %v1042
    %1200 = vmatprep.subr.mxu0 0.0
    %1201 = vmatpush1.msra.mxu0 %v1041
    %1202 = vmatprep.subr.mxu0 0.0
    %1203 = vmatpush1.msra.mxu0 %v1040
    %1204 = vmatprep.subr.mxu0 0.0
    %1205 = vmatpush1.msra.mxu0 %v1039
    %1206 = vmatprep.subr.mxu0 0.0
    %1207 = vmatpush2.msra.mxu0 %v1070
    %1208 = vmatprep.subr.mxu0 0.0
    %1209 = vmatpush2.msra.mxu0 %v1069
    %1210 = vmatprep.subr.mxu0 0.0
    %1211 = vmatpush2.msra.mxu0 %v1068
    %1212 = vmatprep.subr.mxu0 0.0
    %1213 = vmatpush2.msra.mxu0 %v1067
    %1214 = vmatprep.subr.mxu0 0.0
    %1215 = vmatpush2.msra.mxu0 %v1066
    %1216 = vmatprep.subr.mxu0 0.0
    %1217 = vmatpush2.msra.mxu0 %v1065
    %1218 = vmatprep.subr.mxu0 0.0
    %1219 = vmatpush2.msra.mxu0 %v1064
    %1220 = vmatprep.subr.mxu0 0.0
    %1221 = vmatpush2.msra.mxu0 %v1063
    %1222 = vmatprep.subr.mxu0 0.0
    %1223 = vmatpush2.msra.mxu0 %v1062
    %1224 = vmatprep.subr.mxu0 0.0
    %1225 = vmatpush2.msra.mxu0 %v1061
    %1226 = vmatprep.subr.mxu0 0.0
    %1227 = vmatpush2.msra.mxu0 %v1060
    %1228 = vmatprep.subr.mxu0 0.0
    %1229 = vmatpush2.msra.mxu0 %v1059
    %1230 = vmatprep.subr.mxu0 0.0
    %1231 = vmatpush2.msra.mxu0 %v1058
    %1232 = vmatprep.subr.mxu0 0.0
    %1233 = vmatpush2.msra.mxu0 %v1057
    %1234 = vmatprep.subr.mxu0 0.0
    %1235 = vmatpush2.msra.mxu0 %v1056
    %1236 = vmatprep.subr.mxu0 0.0
    %1237 = vmatpush2.msra.mxu0 %v1055
    %1238 = vmatprep.mubr.f32.mxu0 %v1032
    %1239 = vmatmul.mubr.f32.gmra.mxu0 %v1031
    %v1240 = vpop.f32.mrf.mxu0
    %v1241 = vadd.f32 %v1172, %v1240
    %v1242 = vpop.f32.mrf.mxu0
    %1243 = vdwg.mxu0
    %1244 = vmatprep.subr.mxu0 0.0
    %1245 = vmatpush1.msra.mxu0 %v1086
    %1246 = vmatprep.subr.mxu0 0.0
    %1247 = vmatpush1.msra.mxu0 %v1085
    %1248 = vmatprep.subr.mxu0 0.0
    %1249 = vmatpush1.msra.mxu0 %v1084
    %1250 = vmatprep.subr.mxu0 0.0
    %1251 = vmatpush1.msra.mxu0 %v1083
    %1252 = vmatprep.subr.mxu0 0.0
    %1253 = vmatpush1.msra.mxu0 %v1082
    %1254 = vmatprep.subr.mxu0 0.0
    %1255 = vmatpush1.msra.mxu0 %v1081
    %1256 = vmatprep.subr.mxu0 0.0
    %1257 = vmatpush1.msra.mxu0 %v1080
    %1258 = vmatprep.subr.mxu0 0.0
    %1259 = vmatpush1.msra.mxu0 %v1079
    %1260 = vmatprep.subr.mxu0 0.0
    %1261 = vmatpush1.msra.mxu0 %v1078
    %1262 = vmatprep.subr.mxu0 0.0
    %1263 = vmatpush1.msra.mxu0 %v1077
    %1264 = vmatprep.subr.mxu0 0.0
    %1265 = vmatpush1.msra.mxu0 %v1076
    %1266 = vmatprep.subr.mxu0 0.0
    %1267 = vmatpush1.msra.mxu0 %v1075
    %1268 = vmatprep.subr.mxu0 0.0
    %1269 = vmatpush1.msra.mxu0 %v1074
    %1270 = vmatprep.subr.mxu0 0.0
    %1271 = vmatpush1.msra.mxu0 %v1073
    %1272 = vmatprep.subr.mxu0 0.0
    %1273 = vmatpush1.msra.mxu0 %v1072
    %1274 = vmatprep.subr.mxu0 0.0
    %1275 = vmatpush1.msra.mxu0 %v1071
    %1276 = vmatprep.subr.mxu0 0.0
    %1277 = vmatpush2.msra.mxu0 %v1102
    %1278 = vmatprep.subr.mxu0 0.0
    %1279 = vmatpush2.msra.mxu0 %v1101
    %1280 = vmatprep.subr.mxu0 0.0
    %1281 = vmatpush2.msra.mxu0 %v1100
    %1282 = vmatprep.subr.mxu0 0.0
    %1283 = vmatpush2.msra.mxu0 %v1099
    %1284 = vmatprep.subr.mxu0 0.0
    %1285 = vmatpush2.msra.mxu0 %v1098
    %1286 = vmatprep.subr.mxu0 0.0
    %1287 = vmatpush2.msra.mxu0 %v1097
    %1288 = vmatprep.subr.mxu0 0.0
    %1289 = vmatpush2.msra.mxu0 %v1096
    %1290 = vmatprep.subr.mxu0 0.0
    %1291 = vmatpush2.msra.mxu0 %v1095
    %1292 = vmatprep.subr.mxu0 0.0
    %1293 = vmatpush2.msra.mxu0 %v1094
    %1294 = vmatprep.subr.mxu0 0.0
    %1295 = vmatpush2.msra.mxu0 %v1093
    %1296 = vmatprep.subr.mxu0 0.0
    %1297 = vmatpush2.msra.mxu0 %v1092
    %1298 = vmatprep.subr.mxu0 0.0
    %1299 = vmatpush2.msra.mxu0 %v1091
    %1300 = vmatprep.subr.mxu0 0.0
    %1301 = vmatpush2.msra.mxu0 %v1090
    %1302 = vmatprep.subr.mxu0 0.0
    %1303 = vmatpush2.msra.mxu0 %v1089
    %1304 = vmatprep.subr.mxu0 0.0
    %1305 = vmatpush2.msra.mxu0 %v1088
    %1306 = vmatprep.subr.mxu0 0.0
    %1307 = vmatpush2.msra.mxu0 %v1087
    %1308 = vmatprep.mubr.f32.mxu0 %v1034
    %1309 = vmatmul.mubr.f32.gmra.mxu0 %v1033
    %v1310 = vpop.f32.mrf.mxu0
    %v1311 = vadd.f32 %v1241, %v1310
    %v1312 = vpop.f32.mrf.mxu0
    %1313 = vdwg.mxu0
    %1314 = vmatprep.subr.mxu0 0.0
    %1315 = vmatpush1.msra.mxu0 %v1118
    %1316 = vmatprep.subr.mxu0 0.0
    %1317 = vmatpush1.msra.mxu0 %v1117
    %1318 = vmatprep.subr.mxu0 0.0
    %1319 = vmatpush1.msra.mxu0 %v1116
    %1320 = vmatprep.subr.mxu0 0.0
    %1321 = vmatpush1.msra.mxu0 %v1115
    %1322 = vmatprep.subr.mxu0 0.0
    %1323 = vmatpush1.msra.mxu0 %v1114
    %1324 = vmatprep.subr.mxu0 0.0
    %1325 = vmatpush1.msra.mxu0 %v1113
    %1326 = vmatprep.subr.mxu0 0.0
    %1327 = vmatpush1.msra.mxu0 %v1112
    %1328 = vmatprep.subr.mxu0 0.0
    %1329 = vmatpush1.msra.mxu0 %v1111
    %1330 = vmatprep.subr.mxu0 0.0
    %1331 = vmatpush1.msra.mxu0 %v1110
    %1332 = vmatprep.subr.mxu0 0.0
    %1333 = vmatpush1.msra.mxu0 %v1109
    %1334 = vmatprep.subr.mxu0 0.0
    %1335 = vmatpush1.msra.mxu0 %v1108
    %1336 = vmatprep.subr.mxu0 0.0
    %1337 = vmatpush1.msra.mxu0 %v1107
    %1338 = vmatprep.subr.mxu0 0.0
    %1339 = vmatpush1.msra.mxu0 %v1106
    %1340 = vmatprep.subr.mxu0 0.0
    %1341 = vmatpush1.msra.mxu0 %v1105
    %1342 = vmatprep.subr.mxu0 0.0
    %1343 = vmatpush1.msra.mxu0 %v1104
    %1344 = vmatprep.subr.mxu0 0.0
    %1345 = vmatpush1.msra.mxu0 %v1103
    %1346 = vmatprep.subr.mxu0 0.0
    %1347 = vmatpush2.msra.mxu0 %v1134
    %1348 = vmatprep.subr.mxu0 0.0
    %1349 = vmatpush2.msra.mxu0 %v1133
    %1350 = vmatprep.subr.mxu0 0.0
    %1351 = vmatpush2.msra.mxu0 %v1132
    %1352 = vmatprep.subr.mxu0 0.0
    %1353 = vmatpush2.msra.mxu0 %v1131
    %1354 = vmatprep.subr.mxu0 0.0
    %1355 = vmatpush2.msra.mxu0 %v1130
    %1356 = vmatprep.subr.mxu0 0.0
    %1357 = vmatpush2.msra.mxu0 %v1129
    %1358 = vmatprep.subr.mxu0 0.0
    %1359 = vmatpush2.msra.mxu0 %v1128
    %1360 = vmatprep.subr.mxu0 0.0
    %1361 = vmatpush2.msra.mxu0 %v1127
    %1362 = vmatprep.subr.mxu0 0.0
    %1363 = vmatpush2.msra.mxu0 %v1126
    %1364 = vmatprep.subr.mxu0 0.0
    %1365 = vmatpush2.msra.mxu0 %v1125
    %1366 = vmatprep.subr.mxu0 0.0
    %1367 = vmatpush2.msra.mxu0 %v1124
    %1368 = vmatprep.subr.mxu0 0.0
    %1369 = vmatpush2.msra.mxu0 %v1123
    %1370 = vmatprep.subr.mxu0 0.0
    %1371 = vmatpush2.msra.mxu0 %v1122
    %1372 = vmatprep.subr.mxu0 0.0
    %1373 = vmatpush2.msra.mxu0 %v1121
    %1374 = vmatprep.subr.mxu0 0.0
    %1375 = vmatpush2.msra.mxu0 %v1120
    %1376 = vmatprep.subr.mxu0 0.0
    %1377 = vmatpush2.msra.mxu0 %v1119
    %1378 = vmatprep.mubr.f32.mxu0 %v1036
    %1379 = vmatmul.mubr.f32.gmra.mxu0 %v1035
    %v1380 = vpop.f32.mrf.mxu0
    %v1381 = vadd.f32 %v1311, %v1380
    %v1382 = vpop.f32.mrf.mxu0
    %1383 = vdwg.mxu0
    %1384 = vmatprep.subr.mxu0 0.0
    %1385 = vmatpush1.msra.mxu0 %v1150
    %1386 = vmatprep.subr.mxu0 0.0
    %1387 = vmatpush1.msra.mxu0 %v1149
    %1388 = vmatprep.subr.mxu0 0.0
    %1389 = vmatpush1.msra.mxu0 %v1148
    %1390 = vmatprep.subr.mxu0 0.0
    %1391 = vmatpush1.msra.mxu0 %v1147
    %1392 = vmatprep.subr.mxu0 0.0
    %1393 = vmatpush1.msra.mxu0 %v1146
    %1394 = vmatprep.subr.mxu0 0.0
    %1395 = vmatpush1.msra.mxu0 %v1145
    %1396 = vmatprep.subr.mxu0 0.0
    %1397 = vmatpush1.msra.mxu0 %v1144
    %1398 = vmatprep.subr.mxu0 0.0
    %1399 = vmatpush1.msra.mxu0 %v1143
    %1400 = vmatprep.subr.mxu0 0.0
    %1401 = vmatpush1.msra.mxu0 %v1142
    %1402 = vmatprep.subr.mxu0 0.0
    %1403 = vmatpush1.msra.mxu0 %v1141
    %1404 = vmatprep.subr.mxu0 0.0
    %1405 = vmatpush1.msra.mxu0 %v1140
    %1406 = vmatprep.subr.mxu0 0.0
    %1407 = vmatpush1.msra.mxu0 %v1139
    %1408 = vmatprep.subr.mxu0 0.0
    %1409 = vmatpush1.msra.mxu0 %v1138
    %1410 = vmatprep.subr.mxu0 0.0
    %1411 = vmatpush1.msra.mxu0 %v1137
    %1412 = vmatprep.subr.mxu0 0.0
    %1413 = vmatpush1.msra.mxu0 %v1136
    %1414 = vmatprep.subr.mxu0 0.0
    %1415 = vmatpush1.msra.mxu0 %v1135
    %1416 = vmatprep.subr.mxu0 0.0
    %1417 = vmatpush2.msra.mxu0 %v1166
    %1418 = vmatprep.subr.mxu0 0.0
    %1419 = vmatpush2.msra.mxu0 %v1165
    %1420 = vmatprep.subr.mxu0 0.0
    %1421 = vmatpush2.msra.mxu0 %v1164
    %1422 = vmatprep.subr.mxu0 0.0
    %1423 = vmatpush2.msra.mxu0 %v1163
    %1424 = vmatprep.subr.mxu0 0.0
    %1425 = vmatpush2.msra.mxu0 %v1162
    %1426 = vmatprep.subr.mxu0 0.0
    %1427 = vmatpush2.msra.mxu0 %v1161
    %1428 = vmatprep.subr.mxu0 0.0
    %1429 = vmatpush2.msra.mxu0 %v1160
    %1430 = vmatprep.subr.mxu0 0.0
    %1431 = vmatpush2.msra.mxu0 %v1159
    %1432 = vmatprep.subr.mxu0 0.0
    %1433 = vmatpush2.msra.mxu0 %v1158
    %1434 = vmatprep.subr.mxu0 0.0
    %1435 = vmatpush2.msra.mxu0 %v1157
    %1436 = vmatprep.subr.mxu0 0.0
    %1437 = vmatpush2.msra.mxu0 %v1156
    %1438 = vmatprep.subr.mxu0 0.0
    %1439 = vmatpush2.msra.mxu0 %v1155
    %1440 = vmatprep.subr.mxu0 0.0
    %1441 = vmatpush2.msra.mxu0 %v1154
    %1442 = vmatprep.subr.mxu0 0.0
    %1443 = vmatpush2.msra.mxu0 %v1153
    %1444 = vmatprep.subr.mxu0 0.0
    %1445 = vmatpush2.msra.mxu0 %v1152
    %1446 = vmatprep.subr.mxu0 0.0
    %1447 = vmatpush2.msra.mxu0 %v1151
    %1448 = vmatprep.mubr.f32.mxu0 %v1038
    %1449 = vmatmul.mubr.f32.gmra.mxu0 %v1037
    %v1450 = vpop.f32.mrf.mxu0
    %v1451 = vadd.f32 %v1381, %v1450
    %v1452 = vpop.f32.mrf.mxu0
    %1453 = vdwg.mxu0
    %1454 = vst [vmem:[#allocation2] sm:$0xff] %v1451
    // Predicated region
    $region22: #{tpu_custom_call.1} parent=1 // pred_check
      _
    $region23: #{tpu_custom_call.1} parent=1 // pred_check_branch
      %1456 = sbr.rel (0) target = $region25
    $region24: #{tpu_custom_call.1} parent=1 // pred_region
      %s1458 = ssub.s32 128, 128
      %1459 = vsyncadd [#allocation3], %s1458
      %s1461 = sshll.u32 [#allocation2], 4
      %s1462 = int_to_ptr.vmem [resolvable:$true] %s1461
      %1464 = dma.vmem_to_hbm [thread:$0]  %s1462, 128, %s5, [#allocation3]
    $region25: #{tpu_custom_call.1} parent=1 // pred_fallthru
      _
    // Predicated region
    $region26: #{tpu_custom_call.1} parent=1 // pred_check
      _
    $region27: #{tpu_custom_call.1} parent=1 // pred_check_branch
      %1466 = sbr.rel (0) target = $region29
    $region28: #{tpu_custom_call.1} parent=1 // pred_region
      %1467 = dma.done [#allocation3], 128
    $region29: #{tpu_custom_call.1} parent=1 // pred_fallthru
      _
    %1468 = vsyncpa [#allocation3], 1

</llo_original>
